<compile_context>
chip_gen: v5e
topology: v5e:2x2
jax: 0.10.0
libtpu: 0.0.40
codegen_flags: <defaults>
</compile_context>

<pallas_src>
import jax
import jax.numpy as jnp
from jax.experimental import pallas as pl
from jax.experimental.pallas import tpu as pltpu

EPS = 1e-5
LANE = 128
TILE_N_MAX = 2048  # rows (lanes) per grid step; compute-bound kernel -> amortize step overhead


def _round_up(v, m):
    return ((v + m - 1) // m) * m


def mlp_kernel(x_ref,
               w1, b1, w2, b2, w3, b3, w4, b4, w5c, b5,
               out_ref):
    # x_ref: (3, tile) feature-major input slab; out_ref: (1, tile) lane-dense row.
    x = x_ref[...].astype(jnp.float32)          # (3, tile)
    w1v = w1[...]                               # (256, 3) f32

    # Layer 1 (K=3): three broadcast FMAs on the VPU instead of a tiny MXU pass.
    h = (w1v[:, 0:1] * x[0:1, :]
         + w1v[:, 1:2] * x[1:2, :]
         + w1v[:, 2:3] * x[2:3, :]
         + b1[...])
    h = jnp.maximum(h, 0.0)                     # (256, tile)

    def lin_relu(h_f32, w_ref, b_ref):
        w = w_ref[...]                          # (fout, fin), bf16 (or f32)
        z = jnp.dot(w, h_f32.astype(w.dtype), preferred_element_type=jnp.float32)
        return jnp.maximum(z + b_ref[...], 0.0)

    h = lin_relu(h, w2, b2)                     # (128, tile)  BN1 folded into w2/b2
    h = lin_relu(h, w3, b3)                     # (64,  tile)  BN2 folded into w3/b3
    h = lin_relu(h, w4, b4)                     # (32,  tile)  BN3 folded into w4/b4

    # Layer 5 (32 -> 1): sublane reduce (XLU) + bias; BN4 folded into w5c/b5.
    out = jnp.sum(h * w5c[...], axis=0, keepdims=True) + b5[...]   # (1, tile)
    out_ref[...] = out.astype(out_ref.dtype)


def init_params(key):
    """Deterministic synthetic parameters matching the PyTorch module shapes.

    Returns the *unfolded* parameter list in PyTorch orientation:
      [W(out,in), b(out,), (gamma, beta, mean, var) after the first 4 layers] x 5.
    """
    dims = [3, 256, 128, 64, 32, 1]
    params = []
    for li in range(5):
        fin, fout = dims[li], dims[li + 1]
        key, kw, kb = jax.random.split(key, 3)
        bound = 1.0 / (fin ** 0.5)
        w = jax.random.uniform(kw, (fout, fin), jnp.float32, -bound, bound)
        b = jax.random.uniform(kb, (fout,), jnp.float32, -bound, bound)
        params += [w, b]
        if li < 4:  # BatchNorm1d after the first 4 Linear+ReLU blocks
            key, kg, kbt, km, kv = jax.random.split(key, 5)
            gamma = 1.0 + 0.1 * jax.random.normal(kg, (fout,), jnp.float32)
            beta = 0.1 * jax.random.normal(kbt, (fout,), jnp.float32)
            rmean = 0.1 * jax.random.normal(km, (fout,), jnp.float32)
            rvar = jnp.abs(jax.random.normal(kv, (fout,), jnp.float32)) + 0.5
            params += [gamma, beta, rmean, rvar]
    return params


def fold_params(params, mxu_dtype=jnp.bfloat16):
    """Fold each eval-mode BN into the following Linear and lay out feature-major.

    Returns [w1, b1, w2', b2', w3', b3', w4', b4', w5c', b5'] with weights (out,in),
    biases as (out,1) columns, w5 as a (32,1) column for the in-kernel sublane
    reduce, and the MXU-layer weights (w2..w4) cast to `mxu_dtype`.
    """
    (w1, b1, g1, bt1, m1, v1,
     w2, b2, g2, bt2, m2, v2,
     w3, b3, g3, bt3, m3, v3,
     w4, b4, g4, bt4, m4, v4,
     w5, b5) = params

    def fold_into_next(g, bt, m, v, w_next, b_next):
        s = g * jax.lax.rsqrt(v + EPS)          # (fin,)
        t = bt - m * s                          # (fin,)
        w_f = w_next * s[None, :]               # (fout, fin)  == W_next @ diag(s)
        b_f = b_next + w_next @ t               # (fout,)
        return w_f, b_f

    w2f, b2f = fold_into_next(g1, bt1, m1, v1, w2, b2)
    w3f, b3f = fold_into_next(g2, bt2, m2, v2, w3, b3)
    w4f, b4f = fold_into_next(g3, bt3, m3, v3, w4, b4)
    w5f, b5f = fold_into_next(g4, bt4, m4, v4, w5, b5)

    col = lambda b: b.reshape(-1, 1).astype(jnp.float32)
    return [
        w1.astype(jnp.float32),        # (256, 3)   VPU layer stays f32
        col(b1),                       # (256, 1)
        w2f.astype(mxu_dtype),         # (128, 256)
        col(b2f),                      # (128, 1)
        w3f.astype(mxu_dtype),         # (64, 128)
        col(b3f),                      # (64, 1)
        w4f.astype(mxu_dtype),         # (32, 64)
        col(b4f),                      # (32, 1)
        w5f.reshape(32, 1).astype(jnp.float32),   # (32, 1) column for sublane reduce
        col(b5f),                      # (1, 1)
    ]


def mlp_forward(x, folded_params, tile_n_max=TILE_N_MAX):
    n, f = x.shape
    x_t = x.T  # (3, N): feature-major, batch on the 128-lane axis

    tile_n = min(tile_n_max, _round_up(max(n, 1), LANE))
    # v7x megacore: once the batch spans >= 2 lane tiles, split into >= 2 parallel
    # grid steps so both TensorCores get work (no-op on single-TC v5e/v6e).
    if n >= 2 * LANE and pl.cdiv(n, tile_n) < 2:
        tile_n = _round_up(pl.cdiv(n, 2), LANE)
    grid = (pl.cdiv(n, tile_n),)

    def const_spec(p):
        # Whole array resident in VMEM, same block every grid step (no re-DMA).
        return pl.BlockSpec(p.shape, lambda i: (0, 0))

    in_specs = [pl.BlockSpec((f, tile_n), lambda i: (0, i))]
    in_specs += [const_spec(p) for p in folded_params]
    out_specs = pl.BlockSpec((1, tile_n), lambda i: (0, i))

    flops = 2 * n * (3 * 256 + 256 * 128 + 128 * 64 + 64 * 32 + 32 * 1)
    bytes_accessed = 4 * n * (f + 1) + sum(
        int(p.size) * p.dtype.itemsize for p in folded_params)

    out_row = pl.pallas_call(
        mlp_kernel,
        out_shape=jax.ShapeDtypeStruct((1, n), jnp.float32),
        grid=grid,
        in_specs=in_specs,
        out_specs=out_specs,
        compiler_params=pltpu.CompilerParams(
            dimension_semantics=("parallel",),
            vmem_limit_bytes=32 * 1024 * 1024,   # explicit budget; safe on v7x's 64 MiB
        ),
        cost_estimate=pl.CostEstimate(
            flops=flops, transcendentals=0, bytes_accessed=bytes_accessed),
    )(x_t, *folded_params)
    return out_row.reshape(n, 1)


def mlp_reference(x, params):
    """Plain-JAX reference of the eval-mode forward using the UNFOLDED params."""
    h = x.astype(jnp.float32)
    i = 0
    for li in range(5):
        w, b = params[i], params[i + 1]
        i += 2
        h = h @ w.T + b
        if li < 4:
            g, bt, m, v = params[i], params[i + 1], params[i + 2], params[i + 3]
            i += 4
            h = jnp.maximum(h, 0.0)
            h = (h - m) * jax.lax.rsqrt(v + EPS) * g + bt
    return h


if __name__ == "__main__":
    key = jax.random.PRNGKey(0)
    kx, kx2, kp = jax.random.split(key, 3)

    params = init_params(kp)

    # f32 MXU operands: tight check of the kernel structure + BN folding (small batch).
    folded_f32 = fold_params(params, mxu_dtype=jnp.float32)
    batch = 8
    x = jax.random.normal(kx, (batch, 3), jnp.float32)  # (N, 3) = [lat, lon, magType]
    out = jax.block_until_ready(mlp_forward(x, folded_f32))
    ref = mlp_reference(x, params)
    assert out.shape == (batch, 1), out.shape
    assert jnp.allclose(out, ref, atol=1e-4, rtol=1e-4), "mismatch vs reference (f32, small batch)"

    # bf16 MXU operands (production config on v6e/v7x): larger batch exercising the
    # batch grid, the >=2-step megacore split, and a partial last tile.
    folded_bf16 = fold_params(params, mxu_dtype=jnp.bfloat16)
    batch2 = 1000
    x2 = jax.random.normal(kx2, (batch2, 3), jnp.float32)
    out2 = jax.block_until_ready(mlp_forward(x2, folded_bf16))
    ref2 = mlp_reference(x2, params)
    assert out2.shape == (batch2, 1), out2.shape
    assert jnp.allclose(out2, ref2, atol=3e-2, rtol=3e-2), "mismatch vs reference (bf16, tiled batch)"

    print("KERNEL_OK")
</pallas_src>

<mosaic_0001>
module attributes {stable_mosaic.version = 11 : i64} {
  func.func @mlp_kernel(%arg0: i32, %arg1: memref<3x128xf32, #tpu.memory_space<vmem>>, %arg2: memref<256x3xf32, #tpu.memory_space<vmem>>, %arg3: memref<256x1xf32, #tpu.memory_space<vmem>>, %arg4: memref<128x256xf32, #tpu.memory_space<vmem>>, %arg5: memref<128x1xf32, #tpu.memory_space<vmem>>, %arg6: memref<64x128xf32, #tpu.memory_space<vmem>>, %arg7: memref<64x1xf32, #tpu.memory_space<vmem>>, %arg8: memref<32x64xf32, #tpu.memory_space<vmem>>, %arg9: memref<32x1xf32, #tpu.memory_space<vmem>>, %arg10: memref<32x1xf32, #tpu.memory_space<vmem>>, %arg11: memref<1x1xf32, #tpu.memory_space<vmem>>, %arg12: memref<1x128xf32, #tpu.memory_space<vmem>>) attributes {dimension_semantics = [#tpu.dimension_semantics<parallel>], iteration_bounds = array<i64: 1>, scalar_prefetch = 0 : i64, scratch_operands = 0 : i64, tpu.core_type = #tpu.core_type<tc>, window_params = [{transform_indices = @transform_0, window_bounds = array<i64: 3, 128>}, {pipeline_mode = #tpu.pipeline_mode<synchronous>, transform_indices = @transform_1, window_bounds = array<i64: 256, 3>}, {pipeline_mode = #tpu.pipeline_mode<synchronous>, transform_indices = @transform_2, window_bounds = array<i64: 256, 1>}, {pipeline_mode = #tpu.pipeline_mode<synchronous>, transform_indices = @transform_3, window_bounds = array<i64: 128, 256>}, {pipeline_mode = #tpu.pipeline_mode<synchronous>, transform_indices = @transform_4, window_bounds = array<i64: 128, 1>}, {pipeline_mode = #tpu.pipeline_mode<synchronous>, transform_indices = @transform_5, window_bounds = array<i64: 64, 128>}, {pipeline_mode = #tpu.pipeline_mode<synchronous>, transform_indices = @transform_6, window_bounds = array<i64: 64, 1>}, {pipeline_mode = #tpu.pipeline_mode<synchronous>, transform_indices = @transform_7, window_bounds = array<i64: 32, 64>}, {pipeline_mode = #tpu.pipeline_mode<synchronous>, transform_indices = @transform_8, window_bounds = array<i64: 32, 1>}, {pipeline_mode = #tpu.pipeline_mode<synchronous>, transform_indices = @transform_9, window_bounds = array<i64: 32, 1>}, {pipeline_mode = #tpu.pipeline_mode<synchronous>, transform_indices = @transform_10, window_bounds = array<i64: 1, 1>}, {transform_indices = @transform_11, window_bounds = array<i64: 1, 128>}]} {
    %c0 = arith.constant 0 : index
    %c0_0 = arith.constant 0 : index
    %0 = vector.load %arg1[%c0, %c0_0] : memref<3x128xf32, #tpu.memory_space<vmem>>, vector<3x128xf32>
    %c0_1 = arith.constant 0 : index
    %c0_2 = arith.constant 0 : index
    %1 = vector.load %arg2[%c0_1, %c0_2] : memref<256x3xf32, #tpu.memory_space<vmem>>, vector<256x3xf32>
    %2 = vector.extract_strided_slice %1 {offsets = [0, 0], sizes = [256, 1], strides = [1, 1]} : vector<256x3xf32> to vector<256x1xf32>
    %3 = vector.extract_strided_slice %0 {offsets = [0, 0], sizes = [1, 128], strides = [1, 1]} : vector<3x128xf32> to vector<1x128xf32>
    %4 = vector.broadcast %2 : vector<256x1xf32> to vector<256x128xf32>
    %5 = vector.broadcast %3 : vector<1x128xf32> to vector<256x128xf32>
    %6 = arith.mulf %4, %5 : vector<256x128xf32>
    %7 = vector.extract_strided_slice %1 {offsets = [0, 1], sizes = [256, 1], strides = [1, 1]} : vector<256x3xf32> to vector<256x1xf32>
    %8 = vector.extract_strided_slice %0 {offsets = [1, 0], sizes = [1, 128], strides = [1, 1]} : vector<3x128xf32> to vector<1x128xf32>
    %9 = vector.broadcast %7 : vector<256x1xf32> to vector<256x128xf32>
    %10 = vector.broadcast %8 : vector<1x128xf32> to vector<256x128xf32>
    %11 = arith.mulf %9, %10 : vector<256x128xf32>
    %12 = arith.addf %6, %11 : vector<256x128xf32>
    %13 = vector.extract_strided_slice %1 {offsets = [0, 2], sizes = [256, 1], strides = [1, 1]} : vector<256x3xf32> to vector<256x1xf32>
    %14 = vector.extract_strided_slice %0 {offsets = [2, 0], sizes = [1, 128], strides = [1, 1]} : vector<3x128xf32> to vector<1x128xf32>
    %15 = vector.broadcast %13 : vector<256x1xf32> to vector<256x128xf32>
    %16 = vector.broadcast %14 : vector<1x128xf32> to vector<256x128xf32>
    %17 = arith.mulf %15, %16 : vector<256x128xf32>
    %18 = arith.addf %12, %17 : vector<256x128xf32>
    %c0_3 = arith.constant 0 : index
    %c0_4 = arith.constant 0 : index
    %19 = vector.load %arg3[%c0_3, %c0_4] : memref<256x1xf32, #tpu.memory_space<vmem>>, vector<256x1xf32>
    %20 = vector.broadcast %19 : vector<256x1xf32> to vector<256x128xf32>
    %21 = arith.addf %18, %20 : vector<256x128xf32>
    %cst = arith.constant 0.000000e+00 : f32
    %22 = vector.broadcast %cst : f32 to vector<256x128xf32>
    %23 = arith.maximumf %21, %22 : vector<256x128xf32>
    %c0_5 = arith.constant 0 : index
    %c0_6 = arith.constant 0 : index
    %24 = vector.load %arg4[%c0_5, %c0_6] : memref<128x256xf32, #tpu.memory_space<vmem>>, vector<128x256xf32>
    %cst_7 = arith.constant dense<0.000000e+00> : vector<128x128xf32>
    %25 = tpu.matmul %24, %23, %cst_7 {dimension_numbers = #tpu.dot_dimension_numbers<[1], [0], [0], [1], [0, 0, 1, 1], [], []>} : vector<128x256xf32>, vector<256x128xf32>, vector<128x128xf32> -> vector<128x128xf32>
    %c0_8 = arith.constant 0 : index
    %c0_9 = arith.constant 0 : index
    %26 = vector.load %arg5[%c0_8, %c0_9] : memref<128x1xf32, #tpu.memory_space<vmem>>, vector<128x1xf32>
    %27 = vector.broadcast %26 : vector<128x1xf32> to vector<128x128xf32>
    %28 = arith.addf %25, %27 : vector<128x128xf32>
    %cst_10 = arith.constant 0.000000e+00 : f32
    %29 = vector.broadcast %cst_10 : f32 to vector<128x128xf32>
    %30 = arith.maximumf %28, %29 : vector<128x128xf32>
    %c0_11 = arith.constant 0 : index
    %c0_12 = arith.constant 0 : index
    %31 = vector.load %arg6[%c0_11, %c0_12] : memref<64x128xf32, #tpu.memory_space<vmem>>, vector<64x128xf32>
    %cst_13 = arith.constant dense<0.000000e+00> : vector<64x128xf32>
    %32 = tpu.matmul %31, %30, %cst_13 {dimension_numbers = #tpu.dot_dimension_numbers<[1], [0], [0], [1], [0, 0, 1, 1], [], []>} : vector<64x128xf32>, vector<128x128xf32>, vector<64x128xf32> -> vector<64x128xf32>
    %c0_14 = arith.constant 0 : index
    %c0_15 = arith.constant 0 : index
    %33 = vector.load %arg7[%c0_14, %c0_15] : memref<64x1xf32, #tpu.memory_space<vmem>>, vector<64x1xf32>
    %34 = vector.broadcast %33 : vector<64x1xf32> to vector<64x128xf32>
    %35 = arith.addf %32, %34 : vector<64x128xf32>
    %cst_16 = arith.constant 0.000000e+00 : f32
    %36 = vector.broadcast %cst_16 : f32 to vector<64x128xf32>
    %37 = arith.maximumf %35, %36 : vector<64x128xf32>
    %c0_17 = arith.constant 0 : index
    %c0_18 = arith.constant 0 : index
    %38 = vector.load %arg8[%c0_17, %c0_18] : memref<32x64xf32, #tpu.memory_space<vmem>>, vector<32x64xf32>
    %cst_19 = arith.constant dense<0.000000e+00> : vector<32x128xf32>
    %39 = tpu.matmul %38, %37, %cst_19 {dimension_numbers = #tpu.dot_dimension_numbers<[1], [0], [0], [1], [0, 0, 1, 1], [], []>} : vector<32x64xf32>, vector<64x128xf32>, vector<32x128xf32> -> vector<32x128xf32>
    %c0_20 = arith.constant 0 : index
    %c0_21 = arith.constant 0 : index
    %40 = vector.load %arg9[%c0_20, %c0_21] : memref<32x1xf32, #tpu.memory_space<vmem>>, vector<32x1xf32>
    %41 = vector.broadcast %40 : vector<32x1xf32> to vector<32x128xf32>
    %42 = arith.addf %39, %41 : vector<32x128xf32>
    %cst_22 = arith.constant 0.000000e+00 : f32
    %43 = vector.broadcast %cst_22 : f32 to vector<32x128xf32>
    %44 = arith.maximumf %42, %43 : vector<32x128xf32>
    %c0_23 = arith.constant 0 : index
    %c0_24 = arith.constant 0 : index
    %45 = vector.load %arg10[%c0_23, %c0_24] : memref<32x1xf32, #tpu.memory_space<vmem>>, vector<32x1xf32>
    %46 = vector.broadcast %45 : vector<32x1xf32> to vector<32x128xf32>
    %47 = arith.mulf %44, %46 : vector<32x128xf32>
    %cst_25 = arith.constant dense<0.000000e+00> : vector<128xf32>
    %48 = vector.multi_reduction <add>, %47, %cst_25 [0] : vector<32x128xf32> to vector<128xf32>
    %49 = vector.shape_cast %48 : vector<128xf32> to vector<1x128xf32>
    %c0_26 = arith.constant 0 : index
    %c0_27 = arith.constant 0 : index
    %50 = vector.load %arg11[%c0_26, %c0_27] : memref<1x1xf32, #tpu.memory_space<vmem>>, vector<1x1xf32>
    %51 = vector.broadcast %50 : vector<1x1xf32> to vector<1x128xf32>
    %52 = arith.addf %49, %51 : vector<1x128xf32>
    %c0_28 = arith.constant 0 : index
    %c0_29 = arith.constant 0 : index
    %53 = vector.load %arg12[%c0_28, %c0_29] : memref<1x128xf32, #tpu.memory_space<vmem>>, vector<1x128xf32>
    tpu.vector_store %arg12[%c0_28, %c0_29], %52 {strides = array<i32>} : memref<1x128xf32, #tpu.memory_space<vmem>>, vector<1x128xf32>,
    return
  }
  func.func @transform_0(%arg0: i32) -> (i32, i32) {
    %c0_i32 = arith.constant 0 : i32
    %c0_i32_0 = arith.constant 0 : i32
    return %c0_i32, %arg0 : i32, i32
  }
  func.func @transform_1(%arg0: i32) -> (i32, i32) {
    %c0_i32 = arith.constant 0 : i32
    %c0_i32_0 = arith.constant 0 : i32
    %c0_i32_1 = arith.constant 0 : i32
    return %c0_i32, %c0_i32_0 : i32, i32
  }
  func.func @transform_2(%arg0: i32) -> (i32, i32) {
    %c0_i32 = arith.constant 0 : i32
    %c0_i32_0 = arith.constant 0 : i32
    %c0_i32_1 = arith.constant 0 : i32
    return %c0_i32, %c0_i32_0 : i32, i32
  }
  func.func @transform_3(%arg0: i32) -> (i32, i32) {
    %c0_i32 = arith.constant 0 : i32
    %c0_i32_0 = arith.constant 0 : i32
    %c0_i32_1 = arith.constant 0 : i32
    return %c0_i32, %c0_i32_0 : i32, i32
  }
  func.func @transform_4(%arg0: i32) -> (i32, i32) {
    %c0_i32 = arith.constant 0 : i32
    %c0_i32_0 = arith.constant 0 : i32
    %c0_i32_1 = arith.constant 0 : i32
    return %c0_i32, %c0_i32_0 : i32, i32
  }
  func.func @transform_5(%arg0: i32) -> (i32, i32) {
    %c0_i32 = arith.constant 0 : i32
    %c0_i32_0 = arith.constant 0 : i32
    %c0_i32_1 = arith.constant 0 : i32
    return %c0_i32, %c0_i32_0 : i32, i32
  }
  func.func @transform_6(%arg0: i32) -> (i32, i32) {
    %c0_i32 = arith.constant 0 : i32
    %c0_i32_0 = arith.constant 0 : i32
    %c0_i32_1 = arith.constant 0 : i32
    return %c0_i32, %c0_i32_0 : i32, i32
  }
  func.func @transform_7(%arg0: i32) -> (i32, i32) {
    %c0_i32 = arith.constant 0 : i32
    %c0_i32_0 = arith.constant 0 : i32
    %c0_i32_1 = arith.constant 0 : i32
    return %c0_i32, %c0_i32_0 : i32, i32
  }
  func.func @transform_8(%arg0: i32) -> (i32, i32) {
    %c0_i32 = arith.constant 0 : i32
    %c0_i32_0 = arith.constant 0 : i32
    %c0_i32_1 = arith.constant 0 : i32
    return %c0_i32, %c0_i32_0 : i32, i32
  }
  func.func @transform_9(%arg0: i32) -> (i32, i32) {
    %c0_i32 = arith.constant 0 : i32
    %c0_i32_0 = arith.constant 0 : i32
    %c0_i32_1 = arith.constant 0 : i32
    return %c0_i32, %c0_i32_0 : i32, i32
  }
  func.func @transform_10(%arg0: i32) -> (i32, i32) {
    %c0_i32 = arith.constant 0 : i32
    %c0_i32_0 = arith.constant 0 : i32
    %c0_i32_1 = arith.constant 0 : i32
    return %c0_i32, %c0_i32_0 : i32, i32
  }
  func.func @transform_11(%arg0: i32) -> (i32, i32) {
    %c0_i32 = arith.constant 0 : i32
    %c0_i32_0 = arith.constant 0 : i32
    return %c0_i32, %arg0 : i32, i32
  }
}

</mosaic_0001>

<llo_original>
// kernel: tpu_custom_call.1
$region0: #{tpu_custom_call.1}
  #allocation0 [shape = 'u32[]', space=smem, size = 0x4, offset = 0x4, fixed_abs, tag = 'smem constant byte address 0x4 - core index']
  #allocation1 [shape = 'u32[72,128]{1,0:T(1,128)}', space=vmem, size = 0x9000, scoped, tag = 'internal scratch']
  #allocation2 [shape = 'f32[1,1]{1,0:T(1,128)S(1)}', space=vmem, size = 0x200, scoped, tag = 'scoped memory for tpu_custom_call.1']
  %s0 = inlined_call_operand.vmem [shape: f32[3,8], index: 0, kind: input, shape index: {}]
  %s1 = inlined_call_operand.vmem [shape: f32[256,3], index: 1, kind: input, shape index: {}]
  %s2 = inlined_call_operand.vmem [shape: f32[256,1], index: 2, kind: input, shape index: {}]
  %s3 = inlined_call_operand.vmem [shape: f32[128,256], index: 3, kind: input, shape index: {}]
  %s4 = inlined_call_operand.vmem [shape: f32[128,1], index: 4, kind: input, shape index: {}]
  %s5 = inlined_call_operand.vmem [shape: f32[64,128], index: 5, kind: input, shape index: {}]
  %s6 = inlined_call_operand.vmem [shape: f32[64,1], index: 6, kind: input, shape index: {}]
  %s7 = inlined_call_operand.vmem [shape: f32[32,64], index: 7, kind: input, shape index: {}]
  %s8 = inlined_call_operand.vmem [shape: f32[32,1], index: 8, kind: input, shape index: {}]
  %s9 = inlined_call_operand.vmem [shape: f32[32,1], index: 9, kind: input, shape index: {}]
  %s10 = inlined_call_operand.<no memory space> [shape: f32[1,1], index: 10, kind: input, shape index: {}]
  %s11 = inlined_call_operand.hbm [shape: f32[1,8], index: 11, kind: output, shape index: {}]
  %s12 = sld [smem:[#allocation0]]
  $region54: #{tpu_custom_call.1} parent=0
    _
  %s14 = ssub.s32 1, %s12
  %s15 = scalar_select 0, %s14, %s12
  %v16 = vstv %s10
  %17 = vst [vmem:[#allocation2] sm:$0x1] %v16
  $region1: #{tpu_custom_call.1} parent=0
    #allocation3 [shape = 'u8[512]{0}', space=vmem, size = 0x400, scoped, tag = 'output window, operand 0, single buffered']
    #allocation4 [shape = 's32[1]{0}', space=sflag, size = 0x4, scoped, tag = 'scoped memory for tpu_custom_call.1']
    %18 = vsyncpa [#allocation4], 0
    // Predicated region
    $region2: #{tpu_custom_call.1} parent=1 // pred_check
      _
    $region3: #{tpu_custom_call.1} parent=1 // pred_check_branch
      %20 = sbr.rel (0) target = $region5
    $region4: #{tpu_custom_call.1} parent=1 // pred_region
      _
    $region5: #{tpu_custom_call.1} parent=1 // pred_fallthru
      _
    // Predicated region
    $region6: #{tpu_custom_call.1} parent=1 // pred_check
      _
    $region7: #{tpu_custom_call.1} parent=1 // pred_check_branch
      %22 = sbr.rel (0) target = $region9
    $region8: #{tpu_custom_call.1} parent=1 // pred_region
      _
    $region9: #{tpu_custom_call.1} parent=1 // pred_fallthru
      _
    // Predicated region
    $region10: #{tpu_custom_call.1} parent=1 // pred_check
      _
    $region11: #{tpu_custom_call.1} parent=1 // pred_check_branch
      %24 = sbr.rel (0) target = $region13
    $region12: #{tpu_custom_call.1} parent=1 // pred_region
      _
    $region13: #{tpu_custom_call.1} parent=1 // pred_fallthru
      _
    // Predicated region
    $region14: #{tpu_custom_call.1} parent=1 // pred_check
      _
    $region15: #{tpu_custom_call.1} parent=1 // pred_check_branch
      %26 = sbr.rel (0) target = $region17
    $region16: #{tpu_custom_call.1} parent=1 // pred_region
      _
    $region17: #{tpu_custom_call.1} parent=1 // pred_fallthru
      _
    // Predicated region
    $region18: #{tpu_custom_call.1} parent=1 // pred_check
      _
    $region19: #{tpu_custom_call.1} parent=1 // pred_check_branch
      %28 = sbr.rel (0) target = $region21
    $region20: #{tpu_custom_call.1} parent=1 // pred_region
      _
    $region21: #{tpu_custom_call.1} parent=1 // pred_fallthru
      _
    // Predicated region
    $region22: #{tpu_custom_call.1} parent=1 // pred_check
      _
    $region23: #{tpu_custom_call.1} parent=1 // pred_check_branch
      %30 = sbr.rel (0) target = $region25
    $region24: #{tpu_custom_call.1} parent=1 // pred_region
      _
    $region25: #{tpu_custom_call.1} parent=1 // pred_fallthru
      _
    // Predicated region
    $region26: #{tpu_custom_call.1} parent=1 // pred_check
      _
    $region27: #{tpu_custom_call.1} parent=1 // pred_check_branch
      %32 = sbr.rel (0) target = $region29
    $region28: #{tpu_custom_call.1} parent=1 // pred_region
      _
    $region29: #{tpu_custom_call.1} parent=1 // pred_fallthru
      _
    // Predicated region
    $region30: #{tpu_custom_call.1} parent=1 // pred_check
      _
    $region31: #{tpu_custom_call.1} parent=1 // pred_check_branch
      %34 = sbr.rel (0) target = $region33
    $region32: #{tpu_custom_call.1} parent=1 // pred_region
      _
    $region33: #{tpu_custom_call.1} parent=1 // pred_fallthru
      _
    // Predicated region
    $region34: #{tpu_custom_call.1} parent=1 // pred_check
      _
    $region35: #{tpu_custom_call.1} parent=1 // pred_check_branch
      %36 = sbr.rel (0) target = $region37
    $region36: #{tpu_custom_call.1} parent=1 // pred_region
      _
    $region37: #{tpu_custom_call.1} parent=1 // pred_fallthru
      _
    // Predicated region
    $region38: #{tpu_custom_call.1} parent=1 // pred_check
      _
    $region39: #{tpu_custom_call.1} parent=1 // pred_check_branch
      %38 = sbr.rel (0) target = $region41
    $region40: #{tpu_custom_call.1} parent=1 // pred_region
      _
    $region41: #{tpu_custom_call.1} parent=1 // pred_fallthru
      _
    // Predicated region
    $region42: #{tpu_custom_call.1} parent=1 // pred_check
      _
    $region43: #{tpu_custom_call.1} parent=1 // pred_check_branch
      %40 = sbr.rel (0) target = $region45
    $region44: #{tpu_custom_call.1} parent=1 // pred_region
      _
    $region45: #{tpu_custom_call.1} parent=1 // pred_fallthru
      _
    %v41 = vld [vmem:[%s0] sm:$0x7]
    %v42 = vld [vmem:[%s1] sm:$0xff]
    %v43 = vld [vmem:[%s1 + $0x8] sm:$0xff]
    %v44 = vld [vmem:[%s1 + $0x10] sm:$0xff]
    %v45 = vld [vmem:[%s1 + $0x18] sm:$0xff]
    %v46 = vld [vmem:[%s1 + $0x20] sm:$0xff]
    %v47 = vld [vmem:[%s1 + $0x28] sm:$0xff]
    %v48 = vld [vmem:[%s1 + $0x30] sm:$0xff]
    %v49 = vld [vmem:[%s1 + $0x38] sm:$0xff]
    %v50 = vld [vmem:[%s1 + $0x40] sm:$0xff]
    %v51 = vld [vmem:[%s1 + $0x48] sm:$0xff]
    %v52 = vld [vmem:[%s1 + $0x50] sm:$0xff]
    %v53 = vld [vmem:[%s1 + $0x58] sm:$0xff]
    %v54 = vld [vmem:[%s1 + $0x60] sm:$0xff]
    %v55 = vld [vmem:[%s1 + $0x68] sm:$0xff]
    %v56 = vld [vmem:[%s1 + $0x70] sm:$0xff]
    %v57 = vld [vmem:[%s1 + $0x78] sm:$0xff]
    %v58 = vld [vmem:[%s1 + $0x80] sm:$0xff]
    %v59 = vld [vmem:[%s1 + $0x88] sm:$0xff]
    %v60 = vld [vmem:[%s1 + $0x90] sm:$0xff]
    %v61 = vld [vmem:[%s1 + $0x98] sm:$0xff]
    %v62 = vld [vmem:[%s1 + $0xa0] sm:$0xff]
    %v63 = vld [vmem:[%s1 + $0xa8] sm:$0xff]
    %v64 = vld [vmem:[%s1 + $0xb0] sm:$0xff]
    %v65 = vld [vmem:[%s1 + $0xb8] sm:$0xff]
    %v66 = vld [vmem:[%s1 + $0xc0] sm:$0xff]
    %v67 = vld [vmem:[%s1 + $0xc8] sm:$0xff]
    %v68 = vld [vmem:[%s1 + $0xd0] sm:$0xff]
    %v69 = vld [vmem:[%s1 + $0xd8] sm:$0xff]
    %v70 = vld [vmem:[%s1 + $0xe0] sm:$0xff]
    %v71 = vld [vmem:[%s1 + $0xe8] sm:$0xff]
    %v72 = vld [vmem:[%s1 + $0xf0] sm:$0xff]
    %v73 = vld [vmem:[%s1 + $0xf8] sm:$0xff]
    %75 = vset.pattern.permute.xlu0 0
    %76 = vperm.xlu0 %75, %v42
    %v77 = vpop.permute.xlu0 %76
    %80 = vset.pattern.permute.xlu0 0
    %81 = vperm.xlu0 %80, %v43
    %v82 = vpop.permute.xlu0 %81
    %85 = vset.pattern.permute.xlu0 0
    %86 = vperm.xlu0 %85, %v44
    %v87 = vpop.permute.xlu0 %86
    %90 = vset.pattern.permute.xlu0 0
    %91 = vperm.xlu0 %90, %v45
    %v92 = vpop.permute.xlu0 %91
    %95 = vset.pattern.permute.xlu0 0
    %96 = vperm.xlu0 %95, %v46
    %v97 = vpop.permute.xlu0 %96
    %100 = vset.pattern.permute.xlu0 0
    %101 = vperm.xlu0 %100, %v47
    %v102 = vpop.permute.xlu0 %101
    %105 = vset.pattern.permute.xlu0 0
    %106 = vperm.xlu0 %105, %v48
    %v107 = vpop.permute.xlu0 %106
    %110 = vset.pattern.permute.xlu0 0
    %111 = vperm.xlu0 %110, %v49
    %v112 = vpop.permute.xlu0 %111
    %115 = vset.pattern.permute.xlu0 0
    %116 = vperm.xlu0 %115, %v50
    %v117 = vpop.permute.xlu0 %116
    %120 = vset.pattern.permute.xlu0 0
    %121 = vperm.xlu0 %120, %v51
    %v122 = vpop.permute.xlu0 %121
    %125 = vset.pattern.permute.xlu0 0
    %126 = vperm.xlu0 %125, %v52
    %v127 = vpop.permute.xlu0 %126
    %130 = vset.pattern.permute.xlu0 0
    %131 = vperm.xlu0 %130, %v53
    %v132 = vpop.permute.xlu0 %131
    %135 = vset.pattern.permute.xlu0 0
    %136 = vperm.xlu0 %135, %v54
    %v137 = vpop.permute.xlu0 %136
    %140 = vset.pattern.permute.xlu0 0
    %141 = vperm.xlu0 %140, %v55
    %v142 = vpop.permute.xlu0 %141
    %145 = vset.pattern.permute.xlu0 0
    %146 = vperm.xlu0 %145, %v56
    %v147 = vpop.permute.xlu0 %146
    %150 = vset.pattern.permute.xlu0 0
    %151 = vperm.xlu0 %150, %v57
    %v152 = vpop.permute.xlu0 %151
    %155 = vset.pattern.permute.xlu0 0
    %156 = vperm.xlu0 %155, %v58
    %v157 = vpop.permute.xlu0 %156
    %160 = vset.pattern.permute.xlu0 0
    %161 = vperm.xlu0 %160, %v59
    %v162 = vpop.permute.xlu0 %161
    %165 = vset.pattern.permute.xlu0 0
    %166 = vperm.xlu0 %165, %v60
    %v167 = vpop.permute.xlu0 %166
    %170 = vset.pattern.permute.xlu0 0
    %171 = vperm.xlu0 %170, %v61
    %v172 = vpop.permute.xlu0 %171
    %175 = vset.pattern.permute.xlu0 0
    %176 = vperm.xlu0 %175, %v62
    %v177 = vpop.permute.xlu0 %176
    %180 = vset.pattern.permute.xlu0 0
    %181 = vperm.xlu0 %180, %v63
    %v182 = vpop.permute.xlu0 %181
    %185 = vset.pattern.permute.xlu0 0
    %186 = vperm.xlu0 %185, %v64
    %v187 = vpop.permute.xlu0 %186
    %190 = vset.pattern.permute.xlu0 0
    %191 = vperm.xlu0 %190, %v65
    %v192 = vpop.permute.xlu0 %191
    %195 = vset.pattern.permute.xlu0 0
    %196 = vperm.xlu0 %195, %v66
    %v197 = vpop.permute.xlu0 %196
    %200 = vset.pattern.permute.xlu0 0
    %201 = vperm.xlu0 %200, %v67
    %v202 = vpop.permute.xlu0 %201
    %205 = vset.pattern.permute.xlu0 0
    %206 = vperm.xlu0 %205, %v68
    %v207 = vpop.permute.xlu0 %206
    %210 = vset.pattern.permute.xlu0 0
    %211 = vperm.xlu0 %210, %v69
    %v212 = vpop.permute.xlu0 %211
    %215 = vset.pattern.permute.xlu0 0
    %216 = vperm.xlu0 %215, %v70
    %v217 = vpop.permute.xlu0 %216
    %220 = vset.pattern.permute.xlu0 0
    %221 = vperm.xlu0 %220, %v71
    %v222 = vpop.permute.xlu0 %221
    %225 = vset.pattern.permute.xlu0 0
    %226 = vperm.xlu0 %225, %v72
    %v227 = vpop.permute.xlu0 %226
    %230 = vset.pattern.permute.xlu0 0
    %231 = vperm.xlu0 %230, %v73
    %v232 = vpop.permute.xlu0 %231
    %v234 = vperm.slane %v41, 0
    %v235 = vmul.f32 %v77, %v234
    %v236 = vmul.f32 %v82, %v234
    %v237 = vmul.f32 %v87, %v234
    %v238 = vmul.f32 %v92, %v234
    %v239 = vmul.f32 %v97, %v234
    %v240 = vmul.f32 %v102, %v234
    %v241 = vmul.f32 %v107, %v234
    %v242 = vmul.f32 %v112, %v234
    %v243 = vmul.f32 %v117, %v234
    %v244 = vmul.f32 %v122, %v234
    %v245 = vmul.f32 %v127, %v234
    %v246 = vmul.f32 %v132, %v234
    %v247 = vmul.f32 %v137, %v234
    %v248 = vmul.f32 %v142, %v234
    %v249 = vmul.f32 %v147, %v234
    %v250 = vmul.f32 %v152, %v234
    %v251 = vmul.f32 %v157, %v234
    %v252 = vmul.f32 %v162, %v234
    %v253 = vmul.f32 %v167, %v234
    %v254 = vmul.f32 %v172, %v234
    %v255 = vmul.f32 %v177, %v234
    %v256 = vmul.f32 %v182, %v234
    %v257 = vmul.f32 %v187, %v234
    %v258 = vmul.f32 %v192, %v234
    %v259 = vmul.f32 %v197, %v234
    %v260 = vmul.f32 %v202, %v234
    %v261 = vmul.f32 %v207, %v234
    %v262 = vmul.f32 %v212, %v234
    %v263 = vmul.f32 %v217, %v234
    %v264 = vmul.f32 %v222, %v234
    %v265 = vmul.f32 %v227, %v234
    %v266 = vmul.f32 %v232, %v234
    %267 = vset.pattern.permute.xlu0 1
    %268 = vperm.xlu0 %267, %v42
    %v269 = vpop.permute.xlu0 %268
    %271 = vset.pattern.permute.xlu0 1
    %272 = vperm.xlu0 %271, %v43
    %v273 = vpop.permute.xlu0 %272
    %275 = vset.pattern.permute.xlu0 1
    %276 = vperm.xlu0 %275, %v44
    %v277 = vpop.permute.xlu0 %276
    %279 = vset.pattern.permute.xlu0 1
    %280 = vperm.xlu0 %279, %v45
    %v281 = vpop.permute.xlu0 %280
    %283 = vset.pattern.permute.xlu0 1
    %284 = vperm.xlu0 %283, %v46
    %v285 = vpop.permute.xlu0 %284
    %287 = vset.pattern.permute.xlu0 1
    %288 = vperm.xlu0 %287, %v47
    %v289 = vpop.permute.xlu0 %288
    %291 = vset.pattern.permute.xlu0 1
    %292 = vperm.xlu0 %291, %v48
    %v293 = vpop.permute.xlu0 %292
    %295 = vset.pattern.permute.xlu0 1
    %296 = vperm.xlu0 %295, %v49
    %v297 = vpop.permute.xlu0 %296
    %299 = vset.pattern.permute.xlu0 1
    %300 = vperm.xlu0 %299, %v50
    %v301 = vpop.permute.xlu0 %300
    %303 = vset.pattern.permute.xlu0 1
    %304 = vperm.xlu0 %303, %v51
    %v305 = vpop.permute.xlu0 %304
    %307 = vset.pattern.permute.xlu0 1
    %308 = vperm.xlu0 %307, %v52
    %v309 = vpop.permute.xlu0 %308
    %311 = vset.pattern.permute.xlu0 1
    %312 = vperm.xlu0 %311, %v53
    %v313 = vpop.permute.xlu0 %312
    %315 = vset.pattern.permute.xlu0 1
    %316 = vperm.xlu0 %315, %v54
    %v317 = vpop.permute.xlu0 %316
    %319 = vset.pattern.permute.xlu0 1
    %320 = vperm.xlu0 %319, %v55
    %v321 = vpop.permute.xlu0 %320
    %323 = vset.pattern.permute.xlu0 1
    %324 = vperm.xlu0 %323, %v56
    %v325 = vpop.permute.xlu0 %324
    %327 = vset.pattern.permute.xlu0 1
    %328 = vperm.xlu0 %327, %v57
    %v329 = vpop.permute.xlu0 %328
    %331 = vset.pattern.permute.xlu0 1
    %332 = vperm.xlu0 %331, %v58
    %v333 = vpop.permute.xlu0 %332
    %335 = vset.pattern.permute.xlu0 1
    %336 = vperm.xlu0 %335, %v59
    %v337 = vpop.permute.xlu0 %336
    %339 = vset.pattern.permute.xlu0 1
    %340 = vperm.xlu0 %339, %v60
    %v341 = vpop.permute.xlu0 %340
    %343 = vset.pattern.permute.xlu0 1
    %344 = vperm.xlu0 %343, %v61
    %v345 = vpop.permute.xlu0 %344
    %347 = vset.pattern.permute.xlu0 1
    %348 = vperm.xlu0 %347, %v62
    %v349 = vpop.permute.xlu0 %348
    %351 = vset.pattern.permute.xlu0 1
    %352 = vperm.xlu0 %351, %v63
    %v353 = vpop.permute.xlu0 %352
    %355 = vset.pattern.permute.xlu0 1
    %356 = vperm.xlu0 %355, %v64
    %v357 = vpop.permute.xlu0 %356
    %359 = vset.pattern.permute.xlu0 1
    %360 = vperm.xlu0 %359, %v65
    %v361 = vpop.permute.xlu0 %360
    %363 = vset.pattern.permute.xlu0 1
    %364 = vperm.xlu0 %363, %v66
    %v365 = vpop.permute.xlu0 %364
    %367 = vset.pattern.permute.xlu0 1
    %368 = vperm.xlu0 %367, %v67
    %v369 = vpop.permute.xlu0 %368
    %371 = vset.pattern.permute.xlu0 1
    %372 = vperm.xlu0 %371, %v68
    %v373 = vpop.permute.xlu0 %372
    %375 = vset.pattern.permute.xlu0 1
    %376 = vperm.xlu0 %375, %v69
    %v377 = vpop.permute.xlu0 %376
    %379 = vset.pattern.permute.xlu0 1
    %380 = vperm.xlu0 %379, %v70
    %v381 = vpop.permute.xlu0 %380
    %383 = vset.pattern.permute.xlu0 1
    %384 = vperm.xlu0 %383, %v71
    %v385 = vpop.permute.xlu0 %384
    %387 = vset.pattern.permute.xlu0 1
    %388 = vperm.xlu0 %387, %v72
    %v389 = vpop.permute.xlu0 %388
    %391 = vset.pattern.permute.xlu0 1
    %392 = vperm.xlu0 %391, %v73
    %v393 = vpop.permute.xlu0 %392
    %v395 = vperm.slane %v41, 1
    %v396 = vmul.f32 %v269, %v395
    %v397 = vmul.f32 %v273, %v395
    %v398 = vmul.f32 %v277, %v395
    %v399 = vmul.f32 %v281, %v395
    %v400 = vmul.f32 %v285, %v395
    %v401 = vmul.f32 %v289, %v395
    %v402 = vmul.f32 %v293, %v395
    %v403 = vmul.f32 %v297, %v395
    %v404 = vmul.f32 %v301, %v395
    %v405 = vmul.f32 %v305, %v395
    %v406 = vmul.f32 %v309, %v395
    %v407 = vmul.f32 %v313, %v395
    %v408 = vmul.f32 %v317, %v395
    %v409 = vmul.f32 %v321, %v395
    %v410 = vmul.f32 %v325, %v395
    %v411 = vmul.f32 %v329, %v395
    %v412 = vmul.f32 %v333, %v395
    %v413 = vmul.f32 %v337, %v395
    %v414 = vmul.f32 %v341, %v395
    %v415 = vmul.f32 %v345, %v395
    %v416 = vmul.f32 %v349, %v395
    %v417 = vmul.f32 %v353, %v395
    %v418 = vmul.f32 %v357, %v395
    %v419 = vmul.f32 %v361, %v395
    %v420 = vmul.f32 %v365, %v395
    %v421 = vmul.f32 %v369, %v395
    %v422 = vmul.f32 %v373, %v395
    %v423 = vmul.f32 %v377, %v395
    %v424 = vmul.f32 %v381, %v395
    %v425 = vmul.f32 %v385, %v395
    %v426 = vmul.f32 %v389, %v395
    %v427 = vmul.f32 %v393, %v395
    %v428 = vadd.f32 %v235, %v396
    %v429 = vadd.f32 %v236, %v397
    %v430 = vadd.f32 %v237, %v398
    %v431 = vadd.f32 %v238, %v399
    %v432 = vadd.f32 %v239, %v400
    %v433 = vadd.f32 %v240, %v401
    %v434 = vadd.f32 %v241, %v402
    %v435 = vadd.f32 %v242, %v403
    %v436 = vadd.f32 %v243, %v404
    %v437 = vadd.f32 %v244, %v405
    %v438 = vadd.f32 %v245, %v406
    %v439 = vadd.f32 %v246, %v407
    %v440 = vadd.f32 %v247, %v408
    %v441 = vadd.f32 %v248, %v409
    %v442 = vadd.f32 %v249, %v410
    %v443 = vadd.f32 %v250, %v411
    %v444 = vadd.f32 %v251, %v412
    %v445 = vadd.f32 %v252, %v413
    %v446 = vadd.f32 %v253, %v414
    %v447 = vadd.f32 %v254, %v415
    %v448 = vadd.f32 %v255, %v416
    %v449 = vadd.f32 %v256, %v417
    %v450 = vadd.f32 %v257, %v418
    %v451 = vadd.f32 %v258, %v419
    %v452 = vadd.f32 %v259, %v420
    %v453 = vadd.f32 %v260, %v421
    %v454 = vadd.f32 %v261, %v422
    %v455 = vadd.f32 %v262, %v423
    %v456 = vadd.f32 %v263, %v424
    %v457 = vadd.f32 %v264, %v425
    %v458 = vadd.f32 %v265, %v426
    %v459 = vadd.f32 %v266, %v427
    %460 = vset.pattern.permute.xlu0 2
    %461 = vperm.xlu0 %460, %v42
    %v462 = vpop.permute.xlu0 %461
    %464 = vset.pattern.permute.xlu0 2
    %465 = vperm.xlu0 %464, %v43
    %v466 = vpop.permute.xlu0 %465
    %468 = vset.pattern.permute.xlu0 2
    %469 = vperm.xlu0 %468, %v44
    %v470 = vpop.permute.xlu0 %469
    %472 = vset.pattern.permute.xlu0 2
    %473 = vperm.xlu0 %472, %v45
    %v474 = vpop.permute.xlu0 %473
    %476 = vset.pattern.permute.xlu0 2
    %477 = vperm.xlu0 %476, %v46
    %v478 = vpop.permute.xlu0 %477
    %480 = vset.pattern.permute.xlu0 2
    %481 = vperm.xlu0 %480, %v47
    %v482 = vpop.permute.xlu0 %481
    %484 = vset.pattern.permute.xlu0 2
    %485 = vperm.xlu0 %484, %v48
    %v486 = vpop.permute.xlu0 %485
    %488 = vset.pattern.permute.xlu0 2
    %489 = vperm.xlu0 %488, %v49
    %v490 = vpop.permute.xlu0 %489
    %492 = vset.pattern.permute.xlu0 2
    %493 = vperm.xlu0 %492, %v50
    %v494 = vpop.permute.xlu0 %493
    %496 = vset.pattern.permute.xlu0 2
    %497 = vperm.xlu0 %496, %v51
    %v498 = vpop.permute.xlu0 %497
    %500 = vset.pattern.permute.xlu0 2
    %501 = vperm.xlu0 %500, %v52
    %v502 = vpop.permute.xlu0 %501
    %504 = vset.pattern.permute.xlu0 2
    %505 = vperm.xlu0 %504, %v53
    %v506 = vpop.permute.xlu0 %505
    %508 = vset.pattern.permute.xlu0 2
    %509 = vperm.xlu0 %508, %v54
    %v510 = vpop.permute.xlu0 %509
    %512 = vset.pattern.permute.xlu0 2
    %513 = vperm.xlu0 %512, %v55
    %v514 = vpop.permute.xlu0 %513
    %516 = vset.pattern.permute.xlu0 2
    %517 = vperm.xlu0 %516, %v56
    %v518 = vpop.permute.xlu0 %517
    %520 = vset.pattern.permute.xlu0 2
    %521 = vperm.xlu0 %520, %v57
    %v522 = vpop.permute.xlu0 %521
    %524 = vset.pattern.permute.xlu0 2
    %525 = vperm.xlu0 %524, %v58
    %v526 = vpop.permute.xlu0 %525
    %528 = vset.pattern.permute.xlu0 2
    %529 = vperm.xlu0 %528, %v59
    %v530 = vpop.permute.xlu0 %529
    %532 = vset.pattern.permute.xlu0 2
    %533 = vperm.xlu0 %532, %v60
    %v534 = vpop.permute.xlu0 %533
    %536 = vset.pattern.permute.xlu0 2
    %537 = vperm.xlu0 %536, %v61
    %v538 = vpop.permute.xlu0 %537
    %540 = vset.pattern.permute.xlu0 2
    %541 = vperm.xlu0 %540, %v62
    %v542 = vpop.permute.xlu0 %541
    %544 = vset.pattern.permute.xlu0 2
    %545 = vperm.xlu0 %544, %v63
    %v546 = vpop.permute.xlu0 %545
    %548 = vset.pattern.permute.xlu0 2
    %549 = vperm.xlu0 %548, %v64
    %v550 = vpop.permute.xlu0 %549
    %552 = vset.pattern.permute.xlu0 2
    %553 = vperm.xlu0 %552, %v65
    %v554 = vpop.permute.xlu0 %553
    %556 = vset.pattern.permute.xlu0 2
    %557 = vperm.xlu0 %556, %v66
    %v558 = vpop.permute.xlu0 %557
    %560 = vset.pattern.permute.xlu0 2
    %561 = vperm.xlu0 %560, %v67
    %v562 = vpop.permute.xlu0 %561
    %564 = vset.pattern.permute.xlu0 2
    %565 = vperm.xlu0 %564, %v68
    %v566 = vpop.permute.xlu0 %565
    %568 = vset.pattern.permute.xlu0 2
    %569 = vperm.xlu0 %568, %v69
    %v570 = vpop.permute.xlu0 %569
    %572 = vset.pattern.permute.xlu0 2
    %573 = vperm.xlu0 %572, %v70
    %v574 = vpop.permute.xlu0 %573
    %576 = vset.pattern.permute.xlu0 2
    %577 = vperm.xlu0 %576, %v71
    %v578 = vpop.permute.xlu0 %577
    %580 = vset.pattern.permute.xlu0 2
    %581 = vperm.xlu0 %580, %v72
    %v582 = vpop.permute.xlu0 %581
    %584 = vset.pattern.permute.xlu0 2
    %585 = vperm.xlu0 %584, %v73
    %v586 = vpop.permute.xlu0 %585
    %v588 = vperm.slane %v41, 2
    %v589 = vmul.f32 %v462, %v588
    %v590 = vmul.f32 %v466, %v588
    %v591 = vmul.f32 %v470, %v588
    %v592 = vmul.f32 %v474, %v588
    %v593 = vmul.f32 %v478, %v588
    %v594 = vmul.f32 %v482, %v588
    %v595 = vmul.f32 %v486, %v588
    %v596 = vmul.f32 %v490, %v588
    %v597 = vmul.f32 %v494, %v588
    %v598 = vmul.f32 %v498, %v588
    %v599 = vmul.f32 %v502, %v588
    %v600 = vmul.f32 %v506, %v588
    %v601 = vmul.f32 %v510, %v588
    %v602 = vmul.f32 %v514, %v588
    %v603 = vmul.f32 %v518, %v588
    %v604 = vmul.f32 %v522, %v588
    %v605 = vmul.f32 %v526, %v588
    %v606 = vmul.f32 %v530, %v588
    %v607 = vmul.f32 %v534, %v588
    %v608 = vmul.f32 %v538, %v588
    %v609 = vmul.f32 %v542, %v588
    %v610 = vmul.f32 %v546, %v588
    %v611 = vmul.f32 %v550, %v588
    %v612 = vmul.f32 %v554, %v588
    %v613 = vmul.f32 %v558, %v588
    %v614 = vmul.f32 %v562, %v588
    %v615 = vmul.f32 %v566, %v588
    %v616 = vmul.f32 %v570, %v588
    %v617 = vmul.f32 %v574, %v588
    %v618 = vmul.f32 %v578, %v588
    %v619 = vmul.f32 %v582, %v588
    %v620 = vmul.f32 %v586, %v588
    %v621 = vadd.f32 %v428, %v589
    %v622 = vadd.f32 %v429, %v590
    %v623 = vadd.f32 %v430, %v591
    %v624 = vadd.f32 %v431, %v592
    %v625 = vadd.f32 %v432, %v593
    %v626 = vadd.f32 %v433, %v594
    %v627 = vadd.f32 %v434, %v595
    %v628 = vadd.f32 %v435, %v596
    %v629 = vadd.f32 %v436, %v597
    %v630 = vadd.f32 %v437, %v598
    %v631 = vadd.f32 %v438, %v599
    %v632 = vadd.f32 %v439, %v600
    %v633 = vadd.f32 %v440, %v601
    %v634 = vadd.f32 %v441, %v602
    %v635 = vadd.f32 %v442, %v603
    %v636 = vadd.f32 %v443, %v604
    %v637 = vadd.f32 %v444, %v605
    %v638 = vadd.f32 %v445, %v606
    %v639 = vadd.f32 %v446, %v607
    %v640 = vadd.f32 %v447, %v608
    %v641 = vadd.f32 %v448, %v609
    %v642 = vadd.f32 %v449, %v610
    %v643 = vadd.f32 %v450, %v611
    %v644 = vadd.f32 %v451, %v612
    %v645 = vadd.f32 %v452, %v613
    %v646 = vadd.f32 %v453, %v614
    %v647 = vadd.f32 %v454, %v615
    %v648 = vadd.f32 %v455, %v616
    %v649 = vadd.f32 %v456, %v617
    %v650 = vadd.f32 %v457, %v618
    %v651 = vadd.f32 %v458, %v619
    %v652 = vadd.f32 %v459, %v620
    %v653 = vld [vmem:[%s2] sm:$0xff]
    %v654 = vld [vmem:[%s2 + $0x8] sm:$0xff]
    %v655 = vld [vmem:[%s2 + $0x10] sm:$0xff]
    %v656 = vld [vmem:[%s2 + $0x18] sm:$0xff]
    %v657 = vld [vmem:[%s2 + $0x20] sm:$0xff]
    %v658 = vld [vmem:[%s2 + $0x28] sm:$0xff]
    %v659 = vld [vmem:[%s2 + $0x30] sm:$0xff]
    %v660 = vld [vmem:[%s2 + $0x38] sm:$0xff]
    %v661 = vld [vmem:[%s2 + $0x40] sm:$0xff]
    %v662 = vld [vmem:[%s2 + $0x48] sm:$0xff]
    %v663 = vld [vmem:[%s2 + $0x50] sm:$0xff]
    %v664 = vld [vmem:[%s2 + $0x58] sm:$0xff]
    %v665 = vld [vmem:[%s2 + $0x60] sm:$0xff]
    %v666 = vld [vmem:[%s2 + $0x68] sm:$0xff]
    %v667 = vld [vmem:[%s2 + $0x70] sm:$0xff]
    %v668 = vld [vmem:[%s2 + $0x78] sm:$0xff]
    %v669 = vld [vmem:[%s2 + $0x80] sm:$0xff]
    %v670 = vld [vmem:[%s2 + $0x88] sm:$0xff]
    %v671 = vld [vmem:[%s2 + $0x90] sm:$0xff]
    %v672 = vld [vmem:[%s2 + $0x98] sm:$0xff]
    %v673 = vld [vmem:[%s2 + $0xa0] sm:$0xff]
    %v674 = vld [vmem:[%s2 + $0xa8] sm:$0xff]
    %v675 = vld [vmem:[%s2 + $0xb0] sm:$0xff]
    %v676 = vld [vmem:[%s2 + $0xb8] sm:$0xff]
    %v677 = vld [vmem:[%s2 + $0xc0] sm:$0xff]
    %v678 = vld [vmem:[%s2 + $0xc8] sm:$0xff]
    %v679 = vld [vmem:[%s2 + $0xd0] sm:$0xff]
    %v680 = vld [vmem:[%s2 + $0xd8] sm:$0xff]
    %v681 = vld [vmem:[%s2 + $0xe0] sm:$0xff]
    %v682 = vld [vmem:[%s2 + $0xe8] sm:$0xff]
    %v683 = vld [vmem:[%s2 + $0xf0] sm:$0xff]
    %v684 = vld [vmem:[%s2 + $0xf8] sm:$0xff]
    %686 = vset.pattern.permute.xlu0 0
    %687 = vperm.xlu0 %686, %v653
    %v688 = vpop.permute.xlu0 %687
    %691 = vset.pattern.permute.xlu0 0
    %692 = vperm.xlu0 %691, %v654
    %v693 = vpop.permute.xlu0 %692
    %696 = vset.pattern.permute.xlu0 0
    %697 = vperm.xlu0 %696, %v655
    %v698 = vpop.permute.xlu0 %697
    %701 = vset.pattern.permute.xlu0 0
    %702 = vperm.xlu0 %701, %v656
    %v703 = vpop.permute.xlu0 %702
    %706 = vset.pattern.permute.xlu0 0
    %707 = vperm.xlu0 %706, %v657
    %v708 = vpop.permute.xlu0 %707
    %711 = vset.pattern.permute.xlu0 0
    %712 = vperm.xlu0 %711, %v658
    %v713 = vpop.permute.xlu0 %712
    %716 = vset.pattern.permute.xlu0 0
    %717 = vperm.xlu0 %716, %v659
    %v718 = vpop.permute.xlu0 %717
    %721 = vset.pattern.permute.xlu0 0
    %722 = vperm.xlu0 %721, %v660
    %v723 = vpop.permute.xlu0 %722
    %726 = vset.pattern.permute.xlu0 0
    %727 = vperm.xlu0 %726, %v661
    %v728 = vpop.permute.xlu0 %727
    %731 = vset.pattern.permute.xlu0 0
    %732 = vperm.xlu0 %731, %v662
    %v733 = vpop.permute.xlu0 %732
    %736 = vset.pattern.permute.xlu0 0
    %737 = vperm.xlu0 %736, %v663
    %v738 = vpop.permute.xlu0 %737
    %741 = vset.pattern.permute.xlu0 0
    %742 = vperm.xlu0 %741, %v664
    %v743 = vpop.permute.xlu0 %742
    %746 = vset.pattern.permute.xlu0 0
    %747 = vperm.xlu0 %746, %v665
    %v748 = vpop.permute.xlu0 %747
    %751 = vset.pattern.permute.xlu0 0
    %752 = vperm.xlu0 %751, %v666
    %v753 = vpop.permute.xlu0 %752
    %756 = vset.pattern.permute.xlu0 0
    %757 = vperm.xlu0 %756, %v667
    %v758 = vpop.permute.xlu0 %757
    %761 = vset.pattern.permute.xlu0 0
    %762 = vperm.xlu0 %761, %v668
    %v763 = vpop.permute.xlu0 %762
    %766 = vset.pattern.permute.xlu0 0
    %767 = vperm.xlu0 %766, %v669
    %v768 = vpop.permute.xlu0 %767
    %771 = vset.pattern.permute.xlu0 0
    %772 = vperm.xlu0 %771, %v670
    %v773 = vpop.permute.xlu0 %772
    %776 = vset.pattern.permute.xlu0 0
    %777 = vperm.xlu0 %776, %v671
    %v778 = vpop.permute.xlu0 %777
    %781 = vset.pattern.permute.xlu0 0
    %782 = vperm.xlu0 %781, %v672
    %v783 = vpop.permute.xlu0 %782
    %786 = vset.pattern.permute.xlu0 0
    %787 = vperm.xlu0 %786, %v673
    %v788 = vpop.permute.xlu0 %787
    %791 = vset.pattern.permute.xlu0 0
    %792 = vperm.xlu0 %791, %v674
    %v793 = vpop.permute.xlu0 %792
    %796 = vset.pattern.permute.xlu0 0
    %797 = vperm.xlu0 %796, %v675
    %v798 = vpop.permute.xlu0 %797
    %801 = vset.pattern.permute.xlu0 0
    %802 = vperm.xlu0 %801, %v676
    %v803 = vpop.permute.xlu0 %802
    %806 = vset.pattern.permute.xlu0 0
    %807 = vperm.xlu0 %806, %v677
    %v808 = vpop.permute.xlu0 %807
    %811 = vset.pattern.permute.xlu0 0
    %812 = vperm.xlu0 %811, %v678
    %v813 = vpop.permute.xlu0 %812
    %816 = vset.pattern.permute.xlu0 0
    %817 = vperm.xlu0 %816, %v679
    %v818 = vpop.permute.xlu0 %817
    %821 = vset.pattern.permute.xlu0 0
    %822 = vperm.xlu0 %821, %v680
    %v823 = vpop.permute.xlu0 %822
    %826 = vset.pattern.permute.xlu0 0
    %827 = vperm.xlu0 %826, %v681
    %v828 = vpop.permute.xlu0 %827
    %831 = vset.pattern.permute.xlu0 0
    %832 = vperm.xlu0 %831, %v682
    %v833 = vpop.permute.xlu0 %832
    %836 = vset.pattern.permute.xlu0 0
    %837 = vperm.xlu0 %836, %v683
    %v838 = vpop.permute.xlu0 %837
    %841 = vset.pattern.permute.xlu0 0
    %842 = vperm.xlu0 %841, %v684
    %v843 = vpop.permute.xlu0 %842
    %v845 = vadd.f32 %v621, %v688
    %v846 = vadd.f32 %v622, %v693
    %v847 = vadd.f32 %v623, %v698
    %v848 = vadd.f32 %v624, %v703
    %v849 = vadd.f32 %v625, %v708
    %v850 = vadd.f32 %v626, %v713
    %v851 = vadd.f32 %v627, %v718
    %v852 = vadd.f32 %v628, %v723
    %v853 = vadd.f32 %v629, %v728
    %v854 = vadd.f32 %v630, %v733
    %v855 = vadd.f32 %v631, %v738
    %v856 = vadd.f32 %v632, %v743
    %v857 = vadd.f32 %v633, %v748
    %v858 = vadd.f32 %v634, %v753
    %v859 = vadd.f32 %v635, %v758
    %v860 = vadd.f32 %v636, %v763
    %v861 = vadd.f32 %v637, %v768
    %v862 = vadd.f32 %v638, %v773
    %v863 = vadd.f32 %v639, %v778
    %v864 = vadd.f32 %v640, %v783
    %v865 = vadd.f32 %v641, %v788
    %v866 = vadd.f32 %v642, %v793
    %v867 = vadd.f32 %v643, %v798
    %v868 = vadd.f32 %v644, %v803
    %v869 = vadd.f32 %v645, %v808
    %v870 = vadd.f32 %v646, %v813
    %v871 = vadd.f32 %v647, %v818
    %v872 = vadd.f32 %v648, %v823
    %v873 = vadd.f32 %v649, %v828
    %v874 = vadd.f32 %v650, %v833
    %v875 = vadd.f32 %v651, %v838
    %v876 = vadd.f32 %v652, %v843
    %v877 = vmax.f32 %v845, 0.0
    %v878 = vmax.f32 %v846, 0.0
    %v879 = vmax.f32 %v847, 0.0
    %v880 = vmax.f32 %v848, 0.0
    %v881 = vmax.f32 %v849, 0.0
    %v882 = vmax.f32 %v850, 0.0
    %v883 = vmax.f32 %v851, 0.0
    %v884 = vmax.f32 %v852, 0.0
    %v885 = vmax.f32 %v853, 0.0
    %v886 = vmax.f32 %v854, 0.0
    %v887 = vmax.f32 %v855, 0.0
    %v888 = vmax.f32 %v856, 0.0
    %v889 = vmax.f32 %v857, 0.0
    %v890 = vmax.f32 %v858, 0.0
    %v891 = vmax.f32 %v859, 0.0
    %v892 = vmax.f32 %v860, 0.0
    %v893 = vmax.f32 %v861, 0.0
    %v894 = vmax.f32 %v862, 0.0
    %v895 = vmax.f32 %v863, 0.0
    %v896 = vmax.f32 %v864, 0.0
    %v897 = vmax.f32 %v865, 0.0
    %v898 = vmax.f32 %v866, 0.0
    %v899 = vmax.f32 %v867, 0.0
    %v900 = vmax.f32 %v868, 0.0
    %v901 = vmax.f32 %v869, 0.0
    %v902 = vmax.f32 %v870, 0.0
    %v903 = vmax.f32 %v871, 0.0
    %v904 = vmax.f32 %v872, 0.0
    %v905 = vmax.f32 %v873, 0.0
    %v906 = vmax.f32 %v874, 0.0
    %v907 = vmax.f32 %v875, 0.0
    %v908 = vmax.f32 %v876, 0.0
    %v909 = vld [vmem:[%s3] sm:$0xff]
    %v910 = vld [vmem:[%s3 + $0x8] sm:$0xff]
    %v911 = vld [vmem:[%s3 + $0x10] sm:$0xff]
    %v912 = vld [vmem:[%s3 + $0x18] sm:$0xff]
    %v913 = vld [vmem:[%s3 + $0x20] sm:$0xff]
    %v914 = vld [vmem:[%s3 + $0x28] sm:$0xff]
    %v915 = vld [vmem:[%s3 + $0x30] sm:$0xff]
    %v916 = vld [vmem:[%s3 + $0x38] sm:$0xff]
    %v917 = vld [vmem:[%s3 + $0x40] sm:$0xff]
    %v918 = vld [vmem:[%s3 + $0x48] sm:$0xff]
    %v919 = vld [vmem:[%s3 + $0x50] sm:$0xff]
    %v920 = vld [vmem:[%s3 + $0x58] sm:$0xff]
    %v921 = vld [vmem:[%s3 + $0x60] sm:$0xff]
    %v922 = vld [vmem:[%s3 + $0x68] sm:$0xff]
    %v923 = vld [vmem:[%s3 + $0x70] sm:$0xff]
    %v924 = vld [vmem:[%s3 + $0x78] sm:$0xff]
    %v925 = vld [vmem:[%s3 + $0x80] sm:$0xff]
    %v926 = vld [vmem:[%s3 + $0x88] sm:$0xff]
    %v927 = vld [vmem:[%s3 + $0x90] sm:$0xff]
    %v928 = vld [vmem:[%s3 + $0x98] sm:$0xff]
    %v929 = vld [vmem:[%s3 + $0xa0] sm:$0xff]
    %v930 = vld [vmem:[%s3 + $0xa8] sm:$0xff]
    %v931 = vld [vmem:[%s3 + $0xb0] sm:$0xff]
    %v932 = vld [vmem:[%s3 + $0xb8] sm:$0xff]
    %v933 = vld [vmem:[%s3 + $0xc0] sm:$0xff]
    %v934 = vld [vmem:[%s3 + $0xc8] sm:$0xff]
    %v935 = vld [vmem:[%s3 + $0xd0] sm:$0xff]
    %v936 = vld [vmem:[%s3 + $0xd8] sm:$0xff]
    %v937 = vld [vmem:[%s3 + $0xe0] sm:$0xff]
    %v938 = vld [vmem:[%s3 + $0xe8] sm:$0xff]
    %v939 = vld [vmem:[%s3 + $0xf0] sm:$0xff]
    %v940 = vld [vmem:[%s3 + $0xf8] sm:$0xff]
    %v941 = vld [vmem:[%s4] sm:$0xff]
    %v942 = vld [vmem:[%s4 + $0x8] sm:$0xff]
    %v943 = vld [vmem:[%s4 + $0x10] sm:$0xff]
    %v944 = vld [vmem:[%s4 + $0x18] sm:$0xff]
    %v945 = vld [vmem:[%s4 + $0x20] sm:$0xff]
    %v946 = vld [vmem:[%s4 + $0x28] sm:$0xff]
    %v947 = vld [vmem:[%s4 + $0x30] sm:$0xff]
    %v948 = vld [vmem:[%s4 + $0x38] sm:$0xff]
    %v949 = vld [vmem:[%s4 + $0x40] sm:$0xff]
    %v950 = vld [vmem:[%s4 + $0x48] sm:$0xff]
    %v951 = vld [vmem:[%s4 + $0x50] sm:$0xff]
    %v952 = vld [vmem:[%s4 + $0x58] sm:$0xff]
    %v953 = vld [vmem:[%s4 + $0x60] sm:$0xff]
    %v954 = vld [vmem:[%s4 + $0x68] sm:$0xff]
    %v955 = vld [vmem:[%s4 + $0x70] sm:$0xff]
    %v956 = vld [vmem:[%s4 + $0x78] sm:$0xff]
    %958 = vset.pattern.permute.xlu0 0
    %959 = vperm.xlu0 %958, %v941
    %v960 = vpop.permute.xlu0 %959
    %963 = vset.pattern.permute.xlu0 0
    %964 = vperm.xlu0 %963, %v942
    %v965 = vpop.permute.xlu0 %964
    %968 = vset.pattern.permute.xlu0 0
    %969 = vperm.xlu0 %968, %v943
    %v970 = vpop.permute.xlu0 %969
    %973 = vset.pattern.permute.xlu0 0
    %974 = vperm.xlu0 %973, %v944
    %v975 = vpop.permute.xlu0 %974
    %978 = vset.pattern.permute.xlu0 0
    %979 = vperm.xlu0 %978, %v945
    %v980 = vpop.permute.xlu0 %979
    %983 = vset.pattern.permute.xlu0 0
    %984 = vperm.xlu0 %983, %v946
    %v985 = vpop.permute.xlu0 %984
    %988 = vset.pattern.permute.xlu0 0
    %989 = vperm.xlu0 %988, %v947
    %v990 = vpop.permute.xlu0 %989
    %993 = vset.pattern.permute.xlu0 0
    %994 = vperm.xlu0 %993, %v948
    %v995 = vpop.permute.xlu0 %994
    %998 = vset.pattern.permute.xlu0 0
    %999 = vperm.xlu0 %998, %v949
    %v1000 = vpop.permute.xlu0 %999
    %1003 = vset.pattern.permute.xlu0 0
    %1004 = vperm.xlu0 %1003, %v950
    %v1005 = vpop.permute.xlu0 %1004
    %1008 = vset.pattern.permute.xlu0 0
    %1009 = vperm.xlu0 %1008, %v951
    %v1010 = vpop.permute.xlu0 %1009
    %1013 = vset.pattern.permute.xlu0 0
    %1014 = vperm.xlu0 %1013, %v952
    %v1015 = vpop.permute.xlu0 %1014
    %1018 = vset.pattern.permute.xlu0 0
    %1019 = vperm.xlu0 %1018, %v953
    %v1020 = vpop.permute.xlu0 %1019
    %1023 = vset.pattern.permute.xlu0 0
    %1024 = vperm.xlu0 %1023, %v954
    %v1025 = vpop.permute.xlu0 %1024
    %1028 = vset.pattern.permute.xlu0 0
    %1029 = vperm.xlu0 %1028, %v955
    %v1030 = vpop.permute.xlu0 %1029
    %1033 = vset.pattern.permute.xlu0 0
    %1034 = vperm.xlu0 %1033, %v956
    %v1035 = vpop.permute.xlu0 %1034
    %1037 = vmatpush.msra.mxu0 %v892
    %1038 = vmatpush.msra.mxu0 %v891
    %1039 = vmatpush.msra.mxu0 %v890
    %1040 = vmatpush.msra.mxu0 %v889
    %1041 = vmatpush.msra.mxu0 %v888
    %1042 = vmatpush.msra.mxu0 %v887
    %1043 = vmatpush.msra.mxu0 %v886
    %1044 = vmatpush.msra.mxu0 %v885
    %1045 = vmatpush.msra.mxu0 %v884
    %1046 = vmatpush.msra.mxu0 %v883
    %1047 = vmatpush.msra.mxu0 %v882
    %1048 = vmatpush.msra.mxu0 %v881
    %1049 = vmatpush.msra.mxu0 %v880
    %1050 = vmatpush.msra.mxu0 %v879
    %1051 = vmatpush.msra.mxu0 %v878
    %1052 = vmatpush.msra.mxu0 %v877
    %1053 = vmatmul.f32.gmra.mxu0 %v909
    %v1054 = vpop.f32.mrf.mxu0
    %v1055 = vadd.f32 %v960, %v1054
    %1056 = vmatmul.f32.gmra.mxu0 %v911
    %v1057 = vpop.f32.mrf.mxu0
    %v1058 = vadd.f32 %v965, %v1057
    %1059 = vmatmul.f32.gmra.mxu0 %v913
    %v1060 = vpop.f32.mrf.mxu0
    %v1061 = vadd.f32 %v970, %v1060
    %1062 = vmatmul.f32.gmra.mxu0 %v915
    %v1063 = vpop.f32.mrf.mxu0
    %v1064 = vadd.f32 %v975, %v1063
    %1065 = vmatmul.f32.gmra.mxu0 %v917
    %v1066 = vpop.f32.mrf.mxu0
    %v1067 = vadd.f32 %v980, %v1066
    %1068 = vmatmul.f32.gmra.mxu0 %v919
    %v1069 = vpop.f32.mrf.mxu0
    %v1070 = vadd.f32 %v985, %v1069
    %1071 = vmatmul.f32.gmra.mxu0 %v921
    %v1072 = vpop.f32.mrf.mxu0
    %v1073 = vadd.f32 %v990, %v1072
    %1074 = vmatmul.f32.gmra.mxu0 %v923
    %v1075 = vpop.f32.mrf.mxu0
    %v1076 = vadd.f32 %v995, %v1075
    %1077 = vmatmul.f32.gmra.mxu0 %v925
    %v1078 = vpop.f32.mrf.mxu0
    %v1079 = vadd.f32 %v1000, %v1078
    %1080 = vmatmul.f32.gmra.mxu0 %v927
    %v1081 = vpop.f32.mrf.mxu0
    %v1082 = vadd.f32 %v1005, %v1081
    %1083 = vmatmul.f32.gmra.mxu0 %v929
    %v1084 = vpop.f32.mrf.mxu0
    %v1085 = vadd.f32 %v1010, %v1084
    %1086 = vmatmul.f32.gmra.mxu0 %v931
    %v1087 = vpop.f32.mrf.mxu0
    %v1088 = vadd.f32 %v1015, %v1087
    %1089 = vmatmul.f32.gmra.mxu0 %v933
    %v1090 = vpop.f32.mrf.mxu0
    %v1091 = vadd.f32 %v1020, %v1090
    %1092 = vmatmul.f32.gmra.mxu0 %v935
    %v1093 = vpop.f32.mrf.mxu0
    %v1094 = vadd.f32 %v1025, %v1093
    %1095 = vmatmul.f32.gmra.mxu0 %v937
    %v1096 = vpop.f32.mrf.mxu0
    %v1097 = vadd.f32 %v1030, %v1096
    %1098 = vmatmul.f32.gmra.mxu0 %v939
    %v1099 = vpop.f32.mrf.mxu0
    %v1100 = vadd.f32 %v1035, %v1099
    %1101 = vdwg.mxu0
    %1102 = vmatpush.msra.mxu0 %v908
    %1103 = vmatpush.msra.mxu0 %v907
    %1104 = vmatpush.msra.mxu0 %v906
    %1105 = vmatpush.msra.mxu0 %v905
    %1106 = vmatpush.msra.mxu0 %v904
    %1107 = vmatpush.msra.mxu0 %v903
    %1108 = vmatpush.msra.mxu0 %v902
    %1109 = vmatpush.msra.mxu0 %v901
    %1110 = vmatpush.msra.mxu0 %v900
    %1111 = vmatpush.msra.mxu0 %v899
    %1112 = vmatpush.msra.mxu0 %v898
    %1113 = vmatpush.msra.mxu0 %v897
    %1114 = vmatpush.msra.mxu0 %v896
    %1115 = vmatpush.msra.mxu0 %v895
    %1116 = vmatpush.msra.mxu0 %v894
    %1117 = vmatpush.msra.mxu0 %v893
    %1118 = vmatmul.f32.gmra.mxu0 %v910
    %v1119 = vpop.f32.mrf.mxu0
    %v1120 = vadd.f32 %v1055, %v1119
    %1121 = vmatmul.f32.gmra.mxu0 %v912
    %v1122 = vpop.f32.mrf.mxu0
    %v1123 = vadd.f32 %v1058, %v1122
    %1124 = vmatmul.f32.gmra.mxu0 %v914
    %v1125 = vpop.f32.mrf.mxu0
    %v1126 = vadd.f32 %v1061, %v1125
    %1127 = vmatmul.f32.gmra.mxu0 %v916
    %v1128 = vpop.f32.mrf.mxu0
    %v1129 = vadd.f32 %v1064, %v1128
    %1130 = vmatmul.f32.gmra.mxu0 %v918
    %v1131 = vpop.f32.mrf.mxu0
    %v1132 = vadd.f32 %v1067, %v1131
    %1133 = vmatmul.f32.gmra.mxu0 %v920
    %v1134 = vpop.f32.mrf.mxu0
    %v1135 = vadd.f32 %v1070, %v1134
    %1136 = vmatmul.f32.gmra.mxu0 %v922
    %v1137 = vpop.f32.mrf.mxu0
    %v1138 = vadd.f32 %v1073, %v1137
    %1139 = vmatmul.f32.gmra.mxu0 %v924
    %v1140 = vpop.f32.mrf.mxu0
    %v1141 = vadd.f32 %v1076, %v1140
    %1142 = vmatmul.f32.gmra.mxu0 %v926
    %v1143 = vpop.f32.mrf.mxu0
    %v1144 = vadd.f32 %v1079, %v1143
    %1145 = vmatmul.f32.gmra.mxu0 %v928
    %v1146 = vpop.f32.mrf.mxu0
    %v1147 = vadd.f32 %v1082, %v1146
    %1148 = vmatmul.f32.gmra.mxu0 %v930
    %v1149 = vpop.f32.mrf.mxu0
    %v1150 = vadd.f32 %v1085, %v1149
    %1151 = vmatmul.f32.gmra.mxu0 %v932
    %v1152 = vpop.f32.mrf.mxu0
    %v1153 = vadd.f32 %v1088, %v1152
    %1154 = vmatmul.f32.gmra.mxu0 %v934
    %v1155 = vpop.f32.mrf.mxu0
    %v1156 = vadd.f32 %v1091, %v1155
    %1157 = vmatmul.f32.gmra.mxu0 %v936
    %v1158 = vpop.f32.mrf.mxu0
    %v1159 = vadd.f32 %v1094, %v1158
    %1160 = vmatmul.f32.gmra.mxu0 %v938
    %v1161 = vpop.f32.mrf.mxu0
    %v1162 = vadd.f32 %v1097, %v1161
    %1163 = vmatmul.f32.gmra.mxu0 %v940
    %v1164 = vpop.f32.mrf.mxu0
    %v1165 = vadd.f32 %v1100, %v1164
    %1166 = vdwg.mxu0
    %v1167 = vmax.f32 %v1120, 0.0
    %v1168 = vmax.f32 %v1123, 0.0
    %v1169 = vmax.f32 %v1126, 0.0
    %v1170 = vmax.f32 %v1129, 0.0
    %v1171 = vmax.f32 %v1132, 0.0
    %v1172 = vmax.f32 %v1135, 0.0
    %v1173 = vmax.f32 %v1138, 0.0
    %v1174 = vmax.f32 %v1141, 0.0
    %v1175 = vmax.f32 %v1144, 0.0
    %v1176 = vmax.f32 %v1147, 0.0
    %v1177 = vmax.f32 %v1150, 0.0
    %v1178 = vmax.f32 %v1153, 0.0
    %v1179 = vmax.f32 %v1156, 0.0
    %v1180 = vmax.f32 %v1159, 0.0
    %v1181 = vmax.f32 %v1162, 0.0
    %v1182 = vmax.f32 %v1165, 0.0
    %v1183 = vld [vmem:[%s5] sm:$0xff]
    %v1184 = vld [vmem:[%s5 + $0x8] sm:$0xff]
    %v1185 = vld [vmem:[%s5 + $0x10] sm:$0xff]
    %v1186 = vld [vmem:[%s5 + $0x18] sm:$0xff]
    %v1187 = vld [vmem:[%s5 + $0x20] sm:$0xff]
    %v1188 = vld [vmem:[%s5 + $0x28] sm:$0xff]
    %v1189 = vld [vmem:[%s5 + $0x30] sm:$0xff]
    %v1190 = vld [vmem:[%s5 + $0x38] sm:$0xff]
    %v1191 = vld [vmem:[%s6] sm:$0xff]
    %v1192 = vld [vmem:[%s6 + $0x8] sm:$0xff]
    %v1193 = vld [vmem:[%s6 + $0x10] sm:$0xff]
    %v1194 = vld [vmem:[%s6 + $0x18] sm:$0xff]
    %v1195 = vld [vmem:[%s6 + $0x20] sm:$0xff]
    %v1196 = vld [vmem:[%s6 + $0x28] sm:$0xff]
    %v1197 = vld [vmem:[%s6 + $0x30] sm:$0xff]
    %v1198 = vld [vmem:[%s6 + $0x38] sm:$0xff]
    %1200 = vset.pattern.permute.xlu0 0
    %1201 = vperm.xlu0 %1200, %v1191
    %v1202 = vpop.permute.xlu0 %1201
    %1205 = vset.pattern.permute.xlu0 0
    %1206 = vperm.xlu0 %1205, %v1192
    %v1207 = vpop.permute.xlu0 %1206
    %1210 = vset.pattern.permute.xlu0 0
    %1211 = vperm.xlu0 %1210, %v1193
    %v1212 = vpop.permute.xlu0 %1211
    %1215 = vset.pattern.permute.xlu0 0
    %1216 = vperm.xlu0 %1215, %v1194
    %v1217 = vpop.permute.xlu0 %1216
    %1220 = vset.pattern.permute.xlu0 0
    %1221 = vperm.xlu0 %1220, %v1195
    %v1222 = vpop.permute.xlu0 %1221
    %1225 = vset.pattern.permute.xlu0 0
    %1226 = vperm.xlu0 %1225, %v1196
    %v1227 = vpop.permute.xlu0 %1226
    %1230 = vset.pattern.permute.xlu0 0
    %1231 = vperm.xlu0 %1230, %v1197
    %v1232 = vpop.permute.xlu0 %1231
    %1235 = vset.pattern.permute.xlu0 0
    %1236 = vperm.xlu0 %1235, %v1198
    %v1237 = vpop.permute.xlu0 %1236
    %1239 = vmatpush.msra.mxu0 %v1182
    %1240 = vmatpush.msra.mxu0 %v1181
    %1241 = vmatpush.msra.mxu0 %v1180
    %1242 = vmatpush.msra.mxu0 %v1179
    %1243 = vmatpush.msra.mxu0 %v1178
    %1244 = vmatpush.msra.mxu0 %v1177
    %1245 = vmatpush.msra.mxu0 %v1176
    %1246 = vmatpush.msra.mxu0 %v1175
    %1247 = vmatpush.msra.mxu0 %v1174
    %1248 = vmatpush.msra.mxu0 %v1173
    %1249 = vmatpush.msra.mxu0 %v1172
    %1250 = vmatpush.msra.mxu0 %v1171
    %1251 = vmatpush.msra.mxu0 %v1170
    %1252 = vmatpush.msra.mxu0 %v1169
    %1253 = vmatpush.msra.mxu0 %v1168
    %1254 = vmatpush.msra.mxu0 %v1167
    %1255 = vmatmul.f32.gmra.mxu0 %v1183
    %v1256 = vpop.f32.mrf.mxu0
    %v1257 = vadd.f32 %v1202, %v1256
    %1258 = vmatmul.f32.gmra.mxu0 %v1184
    %v1259 = vpop.f32.mrf.mxu0
    %v1260 = vadd.f32 %v1207, %v1259
    %1261 = vmatmul.f32.gmra.mxu0 %v1185
    %v1262 = vpop.f32.mrf.mxu0
    %v1263 = vadd.f32 %v1212, %v1262
    %1264 = vmatmul.f32.gmra.mxu0 %v1186
    %v1265 = vpop.f32.mrf.mxu0
    %v1266 = vadd.f32 %v1217, %v1265
    %1267 = vmatmul.f32.gmra.mxu0 %v1187
    %v1268 = vpop.f32.mrf.mxu0
    %v1269 = vadd.f32 %v1222, %v1268
    %1270 = vmatmul.f32.gmra.mxu0 %v1188
    %v1271 = vpop.f32.mrf.mxu0
    %v1272 = vadd.f32 %v1227, %v1271
    %1273 = vmatmul.f32.gmra.mxu0 %v1189
    %v1274 = vpop.f32.mrf.mxu0
    %v1275 = vadd.f32 %v1232, %v1274
    %1276 = vmatmul.f32.gmra.mxu0 %v1190
    %v1277 = vpop.f32.mrf.mxu0
    %v1278 = vadd.f32 %v1237, %v1277
    %1279 = vdwg.mxu0
    %v1280 = vmax.f32 %v1257, 0.0
    %v1281 = vmax.f32 %v1260, 0.0
    %v1282 = vmax.f32 %v1263, 0.0
    %v1283 = vmax.f32 %v1266, 0.0
    %v1284 = vmax.f32 %v1269, 0.0
    %v1285 = vmax.f32 %v1272, 0.0
    %v1286 = vmax.f32 %v1275, 0.0
    %v1287 = vmax.f32 %v1278, 0.0
    %v1288 = vld [vmem:[%s7] sm:$0xff]
    %v1289 = vld [vmem:[%s7 + $0x8] sm:$0xff]
    %v1290 = vld [vmem:[%s7 + $0x10] sm:$0xff]
    %v1291 = vld [vmem:[%s7 + $0x18] sm:$0xff]
    %v1292 = vld [vmem:[%s8] sm:$0xff]
    %v1293 = vld [vmem:[%s8 + $0x8] sm:$0xff]
    %v1294 = vld [vmem:[%s8 + $0x10] sm:$0xff]
    %v1295 = vld [vmem:[%s8 + $0x18] sm:$0xff]
    %1297 = vset.pattern.permute.xlu0 0
    %1298 = vperm.xlu0 %1297, %v1292
    %v1299 = vpop.permute.xlu0 %1298
    %1302 = vset.pattern.permute.xlu0 0
    %1303 = vperm.xlu0 %1302, %v1293
    %v1304 = vpop.permute.xlu0 %1303
    %1307 = vset.pattern.permute.xlu0 0
    %1308 = vperm.xlu0 %1307, %v1294
    %v1309 = vpop.permute.xlu0 %1308
    %1312 = vset.pattern.permute.xlu0 0
    %1313 = vperm.xlu0 %1312, %v1295
    %v1314 = vpop.permute.xlu0 %1313
    %vm1316 = vcmask 523264
    %v1318 = vsel %vm1316, %v1288, 0
    %v1321 = vsel %vm1316, %v1289, 0
    %v1324 = vsel %vm1316, %v1290, 0
    %v1327 = vsel %vm1316, %v1291, 0
    %1329 = vmatpush.msra.mxu0 0.0
    %1330 = vmatpush.msra.mxu0 0.0
    %1331 = vmatpush.msra.mxu0 0.0
    %1332 = vmatpush.msra.mxu0 0.0
    %1333 = vmatpush.msra.mxu0 0.0
    %1334 = vmatpush.msra.mxu0 0.0
    %1335 = vmatpush.msra.mxu0 0.0
    %1336 = vmatpush.msra.mxu0 0.0
    %1337 = vmatpush.msra.mxu0 %v1287
    %1338 = vmatpush.msra.mxu0 %v1286
    %1339 = vmatpush.msra.mxu0 %v1285
    %1340 = vmatpush.msra.mxu0 %v1284
    %1341 = vmatpush.msra.mxu0 %v1283
    %1342 = vmatpush.msra.mxu0 %v1282
    %1343 = vmatpush.msra.mxu0 %v1281
    %1344 = vmatpush.msra.mxu0 %v1280
    %1345 = vmatmul.f32.gmra.mxu0 %v1318
    %v1346 = vpop.f32.mrf.mxu0
    %v1347 = vadd.f32 %v1299, %v1346
    %1348 = vmatmul.f32.gmra.mxu0 %v1321
    %v1349 = vpop.f32.mrf.mxu0
    %v1350 = vadd.f32 %v1304, %v1349
    %1351 = vmatmul.f32.gmra.mxu0 %v1324
    %v1352 = vpop.f32.mrf.mxu0
    %v1353 = vadd.f32 %v1309, %v1352
    %1354 = vmatmul.f32.gmra.mxu0 %v1327
    %v1355 = vpop.f32.mrf.mxu0
    %v1356 = vadd.f32 %v1314, %v1355
    %1357 = vdwg.mxu0
    %v1358 = vmax.f32 %v1347, 0.0
    %v1359 = vmax.f32 %v1350, 0.0
    %v1360 = vmax.f32 %v1353, 0.0
    %v1361 = vmax.f32 %v1356, 0.0
    %v1362 = vld [vmem:[%s9] sm:$0xff]
    %v1363 = vld [vmem:[%s9 + $0x8] sm:$0xff]
    %v1364 = vld [vmem:[%s9 + $0x10] sm:$0xff]
    %v1365 = vld [vmem:[%s9 + $0x18] sm:$0xff]
    %1367 = vset.pattern.permute.xlu0 0
    %1368 = vperm.xlu0 %1367, %v1362
    %v1369 = vpop.permute.xlu0 %1368
    %1372 = vset.pattern.permute.xlu0 0
    %1373 = vperm.xlu0 %1372, %v1363
    %v1374 = vpop.permute.xlu0 %1373
    %1377 = vset.pattern.permute.xlu0 0
    %1378 = vperm.xlu0 %1377, %v1364
    %v1379 = vpop.permute.xlu0 %1378
    %1382 = vset.pattern.permute.xlu0 0
    %1383 = vperm.xlu0 %1382, %v1365
    %v1384 = vpop.permute.xlu0 %1383
    %v1386 = vmul.f32 %v1358, %v1369
    %v1387 = vmul.f32 %v1359, %v1374
    %v1388 = vmul.f32 %v1360, %v1379
    %v1389 = vmul.f32 %v1361, %v1384
    %v1390 = vadd.f32 %v1386, %v1387
    %v1391 = vadd.f32 %v1390, %v1388
    %v1392 = vadd.f32 %v1391, %v1389
    %v1393 = vrot.slane %v1392, 4
    %v1394 = vadd.f32 %v1392, %v1393
    %v1395 = vrot.slane %v1394, 2
    %v1396 = vadd.f32 %v1394, %v1395
    %v1397 = vrot.slane %v1396, 1
    %v1398 = vadd.f32 %v1396, %v1397
    %v1399 = vld [vmem:[#allocation2] sm:$0x1]
    %1401 = vset.pattern.permute.xlu0 0
    %1402 = vperm.xlu0 %1401, %v1399
    %v1403 = vpop.permute.xlu0 %1402
    %v1405 = vperm.slane %v1403, 0
    %v1406 = vadd.f32 %v1398, %v1405
    %1407 = vst [vmem:[#allocation3] sm:$0x1] %v1406
    // Predicated region
    $region46: #{tpu_custom_call.1} parent=1 // pred_check
      _
    $region47: #{tpu_custom_call.1} parent=1 // pred_check_branch
      %1409 = sbr.rel (0) target = $region49
    $region48: #{tpu_custom_call.1} parent=1 // pred_region
      %1411 = vsyncadd [#allocation4], 0
      %s1413 = sshll.u32 [#allocation3], 4
      %s1414 = int_to_ptr.vmem [resolvable:$true] %s1413
      %s1415 = sshll.u32 %s11, 4
      %s1416 = int_to_ptr.hbm [resolvable:$true] %s1415
      %1418 = dma.vmem_to_hbm [thread:$0]  %s1414, 16, %s1416, [#allocation4]
    $region49: #{tpu_custom_call.1} parent=1 // pred_fallthru
      _
    // Predicated region
    $region50: #{tpu_custom_call.1} parent=1 // pred_check
      _
    $region51: #{tpu_custom_call.1} parent=1 // pred_check_branch
      %1420 = sbr.rel (0) target = $region53
    $region52: #{tpu_custom_call.1} parent=1 // pred_region
      %1422 = dma.done [#allocation4], 16
    $region53: #{tpu_custom_call.1} parent=1 // pred_fallthru
      _
    %1423 = vsyncpa [#allocation4], 1

</llo_original>
